<compile_context>
chip_gen: v7x
topology: tpu7x:2x2x1
jax: 0.10.0
libtpu: 0.0.40
codegen_flags: <defaults>
</compile_context>

<pallas_src>
import jax
import jax.numpy as jnp
from jax.experimental import pallas as pl
from jax.experimental.pallas import tpu as pltpu


def pos_embed(tokens: jax.Array, w_pos: jax.Array) -> jax.Array:
    """tokens: [batch, seq] int array (only its shape is used, matching the
    PyTorch module); w_pos: [n_ctx, d_model]. Returns [batch, seq, d_model]."""
    batch, seq_len = tokens.shape
    n_ctx, d_model = w_pos.shape
    assert seq_len <= n_ctx
    assert batch >= 1

    itemsize = jnp.dtype(w_pos.dtype).itemsize
    slab_bytes = seq_len * d_model * itemsize
    # Single-slab working set; keep comfortably inside v7x's 64 MiB VMEM.
    # TODO(synk): tile over d_model for slabs that exceed this budget.
    assert slab_bytes <= 48 * 1024 * 1024, "tile d_model for very large slabs"
    vmem_limit = int(min(max(2 * slab_bytes, 16 << 20), 56 << 20))

    # Wrapper-side slice: the kernel only ever sees the rows it needs.
    w_pos_slab = w_pos[:seq_len]

    def _pos_embed_kernel(w_pos_ref, out_ref, sem):
        # w_pos_ref : (seq, d_model) VMEM   — resident once for all batches.
        # out_ref   : (batch, seq, d_model) HBM (pl.ANY) — written only by DMA.
        # sem       : (batch,) DMA semaphores.
        # `batch` is a static Python int, so these loops unroll at trace time:
        # all writeback DMAs are issued back-to-back (overlapped), then waited.
        copies = [
            pltpu.make_async_copy(w_pos_ref, out_ref.at[b], sem.at[b])
            for b in range(batch)
        ]
        for cp in copies:
            cp.start()
        for cp in copies:
            cp.wait()

    return pl.pallas_call(
        _pos_embed_kernel,
        out_shape=jax.ShapeDtypeStruct((batch, seq_len, d_model), w_pos.dtype),
        in_specs=[pl.BlockSpec(memory_space=pltpu.MemorySpace.VMEM)],
        out_specs=pl.BlockSpec(memory_space=pl.ANY),
        scratch_shapes=[pltpu.SemaphoreType.DMA((batch,))],
        compiler_params=pltpu.CompilerParams(vmem_limit_bytes=vmem_limit),
        cost_estimate=pl.CostEstimate(
            flops=0,
            transcendentals=0,
            bytes_accessed=(batch + 1) * seq_len * d_model * itemsize,
        ),
    )(w_pos_slab)


if __name__ == "__main__":
    # Small, Config-consistent shapes: n_ctx=16, d_model=128, batch=2, seq=8.
    batch, seq_len = 2, 8
    n_ctx, d_model = 16, 128
    init_range = 0.02

    key = jax.random.PRNGKey(0)
    k_w, k_tok = jax.random.split(key)

    # Deterministic parameter init (matches nn.init.normal_(std=init_range)).
    w_pos = init_range * jax.random.normal(k_w, (n_ctx, d_model), dtype=jnp.float32)
    tokens = jax.random.randint(k_tok, (batch, seq_len), 0, 50257, dtype=jnp.int32)

    out = jax.jit(pos_embed)(tokens, w_pos)
    out = jax.block_until_ready(out)

    # Reference: einops.repeat(W_pos[:seq], 'seq d -> batch seq d')
    ref = jnp.broadcast_to(w_pos[:seq_len][None, :, :], (batch, seq_len, d_model))
    assert out.shape == (batch, seq_len, d_model)
    assert out.dtype == jnp.float32
    assert jnp.allclose(out, ref)

    print("KERNEL_OK")
</pallas_src>

<mosaic_0001>
module attributes {stable_mosaic.version = 11 : i64} {
  func.func @_pos_embed_kernel(%arg0: memref<8x128xf32, #tpu.memory_space<vmem>>, %arg1: memref<2x8x128xf32, #tpu.memory_space<any>>, %arg2: memref<2x!tpu.dma_semaphore, #tpu.memory_space<semaphore_mem>>) attributes {dimension_semantics = [], scalar_prefetch = 0 : i64, scratch_operands = 1 : i64, tpu.core_type = #tpu.core_type<tc>} {
    %c0_i32 = arith.constant 0 : i32
    %c0_i32_0 = arith.constant 0 : i32
    %c0_i32_1 = arith.constant 0 : i32
    %c0_i32_2 = arith.constant 0 : i32
    %0 = tpu.memref_slice %arg1[%c0_i32, %c0_i32_1, %c0_i32_2] : memref<2x8x128xf32, #tpu.memory_space<any>> -> memref<1x8x128xf32, #tpu.memory_space<any>>
    %1 = tpu.memref_squeeze %0 : memref<1x8x128xf32, #tpu.memory_space<any>> -> memref<8x128xf32, #tpu.memory_space<any>>
    %2 = tpu.memref_slice %arg2[%c0_i32_0] : memref<2x!tpu.dma_semaphore, #tpu.memory_space<semaphore_mem>> -> memref<1x!tpu.dma_semaphore, #tpu.memory_space<semaphore_mem>>
    %3 = tpu.memref_squeeze %2 : memref<1x!tpu.dma_semaphore, #tpu.memory_space<semaphore_mem>> -> memref<!tpu.dma_semaphore, #tpu.memory_space<semaphore_mem>>
    tpu.enqueue_dma source(%arg0 : memref<8x128xf32, #tpu.memory_space<vmem>>) target(%1 : memref<8x128xf32, #tpu.memory_space<any>>) target_semaphore(%3 : memref<!tpu.dma_semaphore, #tpu.memory_space<semaphore_mem>>)
    %c1_i32 = arith.constant 1 : i32
    %c1_i32_3 = arith.constant 1 : i32
    %c0_i32_4 = arith.constant 0 : i32
    %c0_i32_5 = arith.constant 0 : i32
    %4 = tpu.memref_slice %arg1[%c1_i32, %c0_i32_4, %c0_i32_5] : memref<2x8x128xf32, #tpu.memory_space<any>> -> memref<1x8x128xf32, #tpu.memory_space<any>>
    %5 = tpu.memref_squeeze %4 : memref<1x8x128xf32, #tpu.memory_space<any>> -> memref<8x128xf32, #tpu.memory_space<any>>
    %6 = tpu.memref_slice %arg2[%c1_i32_3] : memref<2x!tpu.dma_semaphore, #tpu.memory_space<semaphore_mem>> -> memref<1x!tpu.dma_semaphore, #tpu.memory_space<semaphore_mem>>
    %7 = tpu.memref_squeeze %6 : memref<1x!tpu.dma_semaphore, #tpu.memory_space<semaphore_mem>> -> memref<!tpu.dma_semaphore, #tpu.memory_space<semaphore_mem>>
    tpu.enqueue_dma source(%arg0 : memref<8x128xf32, #tpu.memory_space<vmem>>) target(%5 : memref<8x128xf32, #tpu.memory_space<any>>) target_semaphore(%7 : memref<!tpu.dma_semaphore, #tpu.memory_space<semaphore_mem>>)
    %c0_i32_6 = arith.constant 0 : i32
    %c0_i32_7 = arith.constant 0 : i32
    %c0_i32_8 = arith.constant 0 : i32
    %c0_i32_9 = arith.constant 0 : i32
    %8 = tpu.memref_slice %arg1[%c0_i32_6, %c0_i32_8, %c0_i32_9] : memref<2x8x128xf32, #tpu.memory_space<any>> -> memref<1x8x128xf32, #tpu.memory_space<any>>
    %9 = tpu.memref_squeeze %8 : memref<1x8x128xf32, #tpu.memory_space<any>> -> memref<8x128xf32, #tpu.memory_space<any>>
    %10 = tpu.memref_slice %arg2[%c0_i32_7] : memref<2x!tpu.dma_semaphore, #tpu.memory_space<semaphore_mem>> -> memref<1x!tpu.dma_semaphore, #tpu.memory_space<semaphore_mem>>
    %11 = tpu.memref_squeeze %10 : memref<1x!tpu.dma_semaphore, #tpu.memory_space<semaphore_mem>> -> memref<!tpu.dma_semaphore, #tpu.memory_space<semaphore_mem>>
    tpu.wait_dma2 semaphore(%11 : memref<!tpu.dma_semaphore, #tpu.memory_space<semaphore_mem>>) src(%arg0 : memref<8x128xf32, #tpu.memory_space<vmem>>) dst(%9 : memref<8x128xf32, #tpu.memory_space<any>>)
    %c1_i32_10 = arith.constant 1 : i32
    %c1_i32_11 = arith.constant 1 : i32
    %c0_i32_12 = arith.constant 0 : i32
    %c0_i32_13 = arith.constant 0 : i32
    %12 = tpu.memref_slice %arg1[%c1_i32_10, %c0_i32_12, %c0_i32_13] : memref<2x8x128xf32, #tpu.memory_space<any>> -> memref<1x8x128xf32, #tpu.memory_space<any>>
    %13 = tpu.memref_squeeze %12 : memref<1x8x128xf32, #tpu.memory_space<any>> -> memref<8x128xf32, #tpu.memory_space<any>>
    %14 = tpu.memref_slice %arg2[%c1_i32_11] : memref<2x!tpu.dma_semaphore, #tpu.memory_space<semaphore_mem>> -> memref<1x!tpu.dma_semaphore, #tpu.memory_space<semaphore_mem>>
    %15 = tpu.memref_squeeze %14 : memref<1x!tpu.dma_semaphore, #tpu.memory_space<semaphore_mem>> -> memref<!tpu.dma_semaphore, #tpu.memory_space<semaphore_mem>>
    tpu.wait_dma2 semaphore(%15 : memref<!tpu.dma_semaphore, #tpu.memory_space<semaphore_mem>>) src(%arg0 : memref<8x128xf32, #tpu.memory_space<vmem>>) dst(%13 : memref<8x128xf32, #tpu.memory_space<any>>)
    return
  }
}

</mosaic_0001>

<llo_original>
// kernel: pos_embed.1
$region0: #{pos_embed.1}
  #allocation0 [shape = 'u32[]', space=smem, size = 0x4, offset = 0x4, fixed_abs, tag = 'smem constant byte address 0x4 - core index']
  #allocation1 [shape = 'u32[144,128]{1,0:T(1,128)}', space=vmem, size = 0x12000, scoped, tag = 'internal scratch']
  #allocation2 [shape = 's32[2]{0}', space=sflag, size = 0x8, scoped, tag = 'scratch operand']
  #allocation3 [shape = 's32[]', space=sflag, size = 0x4, offset = 0, fixed_abs, tag = 'sflag constant byte address 0x0 - dummy sync flag']
  #allocation4 [shape = 's32[]', space=sflag, size = 0x4, offset = 0, fixed_abs, tag = 'sflag constant byte address 0x0 - dummy sync flag']
  #allocation5 [shape = 'u32[]', space=smem, size = 0x4, offset = 0x44, fixed_abs, tag = 'smem constant byte address 0x44 - assertion arg 0']
  #allocation6 [shape = 'u32[]', space=smem, size = 0x4, offset = 0x48, fixed_abs, tag = 'smem constant byte address 0x48 - assertion arg 1']
  #allocation7 [shape = 's32[]', space=sflag, size = 0x4, offset = 0, fixed_abs, tag = 'sflag constant byte address 0x0 - dummy sync flag']
  #allocation8 [shape = 's32[]', space=sflag, size = 0x4, offset = 0, fixed_abs, tag = 'sflag constant byte address 0x0 - dummy sync flag']
  %s0 = inlined_call_operand.vmem [shape: f32[8,128], index: 0, kind: input, shape index: {}]
  %s1 = inlined_call_operand.hbm [shape: f32[2,8,128], index: 1, kind: output, shape index: {}]
  %s2 = sld [smem:[#allocation0]]
  $region14: #{pos_embed.1} parent=0
    _
  %s4 = ssub.s32 1, %s2
  %s5 = scalar_select 0, %s4, %s2
  // Predicated region
  $region2: #{pos_embed.1} parent=0 // pred_check
    _
  $region3: #{pos_embed.1} parent=0 // pred_check_branch
    %7 = sbr.rel (0) target = $region5
  $region4: #{pos_embed.1} parent=0 // pred_region
    _
  $region5: #{pos_embed.1} parent=0 // pred_fallthru
    _
  // Predicated region
  $region6: #{pos_embed.1} parent=0 // pred_check
    _
  $region7: #{pos_embed.1} parent=0 // pred_check_branch
    %9 = sbr.rel target = $region9
  $region8: #{pos_embed.1} parent=0 // pred_region
    %10 = sst [smem:[#allocation5]] [#allocation4]
    %11 = sst [smem:[#allocation6]] [#allocation3]
  $region9: #{pos_embed.1} parent=0 // pred_fallthru
    _
  %13 = shalt.err (0)
  %s15 = sshll.u32 %s0, 4
  %s16 = int_to_ptr.vmem [resolvable:$true] %s15
  %18 = dma.vmem_to_hbm [thread:$0]  %s16, 128, %s1, [#allocation2]
  %s19 = scalar_lea.hbm %s1, 128
  %s20 = scalar_lea.sflag [#allocation2], 1
  // Predicated region
  $region10: #{pos_embed.1} parent=0 // pred_check
    _
  $region11: #{pos_embed.1} parent=0 // pred_check_branch
    %22 = sbr.rel target = $region13
  $region12: #{pos_embed.1} parent=0 // pred_region
    %23 = sst [smem:[#allocation5]] [#allocation8]
    %24 = sst [smem:[#allocation6]] [#allocation7]
  $region13: #{pos_embed.1} parent=0 // pred_fallthru
    _
  %26 = shalt.err (0)
  %s28 = sshll.u32 %s0, 4
  %s29 = int_to_ptr.vmem [resolvable:$true] %s28
  %31 = dma.vmem_to_hbm [thread:$0]  %s29, 128, %s19, %s20
  %s32 = smul.u32 8, 1
  %s33 = sshll.u32 %s32, 4
  %34 = dma.done [#allocation2], %s33
  %s35 = sshll.u32 %s32, 4
  %36 = dma.done %s20, %s35
  %37 = vsyncmov [#allocation2]
  %s38 = vpop.sfrf %37
  %p39 = scmp.eq.s32.totalorder %s38, 0
  %p40 = pneg %p39
  %42 = shalt.err (%p40)
  %s43 = scalar_lea.sflag [#allocation2], 1
  %44 = vsyncmov %s43
  %s45 = vpop.sfrf %44
  %p46 = scmp.eq.s32.totalorder %s45, 0
  %p47 = pneg %p46
  %49 = shalt.err (%p47)

</llo_original>
